<compile_context>
chip_gen: v7x
topology: tpu7x:2x2x1
jax: 0.10.0
libtpu: 0.0.40
codegen_flags: <defaults>
</compile_context>

<pallas_src>
import functools

import jax
import jax.numpy as jnp
from jax.experimental import pallas as pl
from jax.experimental.pallas import tpu as pltpu

LOG_SIG_MAX = 2.0
LOG_SIG_MIN = -20.0
_BIG = 1e30  # "no clamp" bound used for the mean / padding lanes


def _round_up(x, m):
    return ((x + m - 1) // m) * m


# ----------------------------------------------------------------------------
# Kernel
# ----------------------------------------------------------------------------
def _policy_kernel(state_ref, w1_ref, b1_ref, w2_ref, b2_ref,
                   wh_ref, bh_ref, hi_ref, lo_ref, out_ref):
    """One batch tile: 3 matmuls (2 hidden layers + fused, lane-padded heads)."""
    wd = w1_ref.dtype  # weight dtype (bf16); f32 accumulation everywhere.

    # x = relu(state @ W1 + b1)
    x = jnp.dot(state_ref[...].astype(wd), w1_ref[...],
                preferred_element_type=jnp.float32)
    x = jnp.maximum(x + b1_ref[...], 0.0)

    # x = relu(x @ W2 + b2)
    x = jnp.dot(x.astype(wd), w2_ref[...],
                preferred_element_type=jnp.float32)
    x = jnp.maximum(x + b2_ref[...], 0.0)

    # Fused heads: [mean | log_stddev | pad] = x @ Wh + bh
    head = jnp.dot(x.astype(wd), wh_ref[...],
                   preferred_element_type=jnp.float32) + bh_ref[...]

    # Per-column clamp via precomputed bound vectors: log_stddev columns are
    # clamped to [LOG_SIG_MIN, LOG_SIG_MAX]; mean / padding columns use +-BIG
    # (a no-op).  Just 2 VALU ops, no iota/select, no in-kernel slicing.
    out_ref[...] = jnp.minimum(jnp.maximum(head, lo_ref[...]),
                               hi_ref[...]).astype(out_ref.dtype)


# ----------------------------------------------------------------------------
# Parameter preparation (one-time; NOT in the per-call hot path)
# ----------------------------------------------------------------------------
def prepare_params(params, weight_dtype=jnp.bfloat16):
    """PyTorch-convention params -> kernel-layout, lane-padded params.

    Weights are pre-transposed to (in, out), zero-padded so that every matmul
    dimension (O, H, 2A) is a multiple of 128 lanes, the two heads are fused
    into a single (H_pad, A2_pad) weight / (1, A2_pad) bias, and weights are
    cast to `weight_dtype` (bf16 by default).  Biases and the per-column clamp
    bound vectors stay f32 (applied post-accumulation).
    """
    w1 = jnp.asarray(params["w1"], jnp.float32).T   # (O, H)
    w2 = jnp.asarray(params["w2"], jnp.float32).T   # (H, H)
    wm = jnp.asarray(params["wm"], jnp.float32).T   # (H, A)
    ws = jnp.asarray(params["ws"], jnp.float32).T   # (H, A)
    b1 = jnp.asarray(params["b1"], jnp.float32)
    b2 = jnp.asarray(params["b2"], jnp.float32)
    bm = jnp.asarray(params["bm"], jnp.float32)
    bs = jnp.asarray(params["bs"], jnp.float32)

    O, H = w1.shape
    A = wm.shape[1]
    A2 = 2 * A
    O_pad = _round_up(O, 128)
    H_pad = _round_up(H, 128)
    A2_pad = _round_up(A2, 128)

    def pad2(x, rows, cols):
        return jnp.pad(x, ((0, rows - x.shape[0]), (0, cols - x.shape[1])))

    w_head = jnp.concatenate([wm, ws], axis=1)               # (H, 2A)
    b_head = jnp.concatenate([bm, bs])                       # (2A,)

    # Per-column clamp bounds over the padded head width.
    col = jnp.arange(A2_pad)
    is_logstd = (col >= A) & (col < A2)
    hi = jnp.where(is_logstd, LOG_SIG_MAX, _BIG).astype(jnp.float32)
    lo = jnp.where(is_logstd, LOG_SIG_MIN, -_BIG).astype(jnp.float32)

    return dict(
        w1=pad2(w1, O_pad, H_pad).astype(weight_dtype),
        b1=jnp.pad(b1, (0, H_pad - H)).reshape(1, H_pad).astype(jnp.float32),
        w2=pad2(w2, H_pad, H_pad).astype(weight_dtype),
        b2=jnp.pad(b2, (0, H_pad - H)).reshape(1, H_pad).astype(jnp.float32),
        w_head=pad2(w_head, H_pad, A2_pad).astype(weight_dtype),
        b_head=jnp.pad(b_head, (0, A2_pad - A2)).reshape(1, A2_pad).astype(jnp.float32),
        clip_hi=hi.reshape(1, A2_pad),
        clip_lo=lo.reshape(1, A2_pad),
    )


# ----------------------------------------------------------------------------
# Forward wrapper
# ----------------------------------------------------------------------------
@functools.partial(jax.jit, static_argnames=("num_actions", "block_b"))
def gaussian_policy_forward(state, prepared, num_actions, block_b=None):
    """Pallas implementation of GuassianPolicy.forward.

    state:       (B, num_observations) float32
    prepared:    output of prepare_params()
    num_actions: static int (needed to slice mean/log_std out of the padded slab)
    returns (mean, log_stddev), each (B, num_actions) float32
    """
    B, O = state.shape
    O_pad, H_pad = prepared["w1"].shape
    A2_pad = prepared["w_head"].shape[1]
    A = num_actions

    # ---- batch tiling: minimize padding & grid steps; >=2 steps for big B ----
    B8 = _round_up(B, 8)
    if block_b is None:
        if B8 <= 256:
            block_b = B8                       # one grid step (overhead-bound net)
        else:
            n_steps = max(2, pl.cdiv(B8, 512))  # >=2 so v7x dual-TC can shard batch
            block_b = _round_up(pl.cdiv(B8, n_steps), 8)
            cand = _round_up(block_b, 256)      # full MXU height on v6e/v7x
            if cand * n_steps <= B8 + 8 * n_steps:  # only if ~no extra padded rows
                block_b = cand
    B_pad = _round_up(B, block_b)
    grid = (B_pad // block_b,)

    # Pad batch rows and observation lanes in a single pad (only if needed).
    pad_b, pad_o = B_pad - B, O_pad - O
    state_in = state
    if pad_b or pad_o:
        state_in = jnp.pad(state, ((0, pad_b), (0, pad_o)))

    param_bytes = sum(int(prepared[k].size) * prepared[k].dtype.itemsize
                      for k in prepared)
    cost = pl.CostEstimate(
        flops=2 * B_pad * (O_pad * H_pad + H_pad * H_pad + H_pad * A2_pad),
        transcendentals=0,
        # Weights are VMEM-resident across the grid -> counted once.
        bytes_accessed=B_pad * O_pad * 4 + B_pad * A2_pad * 4 + param_bytes,
    )

    # Explicit VMEM budget: double-buffered params + I/O tiles + activations.
    io_bytes = 4 * block_b * (O_pad + A2_pad)
    act_bytes = 4 * block_b * max(H_pad, A2_pad)
    vmem_need = 2 * (param_bytes + io_bytes) + 4 * act_bytes + (1 << 20)
    vmem_limit = int(min(max(vmem_need, 32 << 20), 127 << 20))

    out = pl.pallas_call(
        _policy_kernel,
        out_shape=jax.ShapeDtypeStruct((B_pad, A2_pad), jnp.float32),
        grid=grid,
        in_specs=[
            pl.BlockSpec((block_b, O_pad), lambda i: (i, 0)),   # state tile
            pl.BlockSpec((O_pad, H_pad), lambda i: (0, 0)),     # resident weights
            pl.BlockSpec((1, H_pad), lambda i: (0, 0)),
            pl.BlockSpec((H_pad, H_pad), lambda i: (0, 0)),
            pl.BlockSpec((1, H_pad), lambda i: (0, 0)),
            pl.BlockSpec((H_pad, A2_pad), lambda i: (0, 0)),
            pl.BlockSpec((1, A2_pad), lambda i: (0, 0)),
            pl.BlockSpec((1, A2_pad), lambda i: (0, 0)),        # clip hi
            pl.BlockSpec((1, A2_pad), lambda i: (0, 0)),        # clip lo
        ],
        out_specs=pl.BlockSpec((block_b, A2_pad), lambda i: (i, 0)),
        compiler_params=pltpu.CompilerParams(
            dimension_semantics=("parallel",),
            vmem_limit_bytes=vmem_limit),
        cost_estimate=cost,
    )(state_in, prepared["w1"], prepared["b1"], prepared["w2"], prepared["b2"],
      prepared["w_head"], prepared["b_head"],
      prepared["clip_hi"], prepared["clip_lo"])

    # Mean lives at cols [0, A), log_stddev at [A, 2A); padding beyond 2A.
    mean = out[:B, :A]
    log_std = out[:B, A:2 * A]
    return mean, log_std


# ----------------------------------------------------------------------------
# PyTorch-style init + references
# ----------------------------------------------------------------------------
def init_params(key, num_observations, num_actions, hidden_size):
    """Deterministic PyTorch-style (out,in) weight init."""
    ks = jax.random.split(key, 8)

    def linear(kw, kb, fan_in, fan_out):
        bound = 1.0 / jnp.sqrt(fan_in)
        w = jax.random.uniform(kw, (fan_out, fan_in), jnp.float32, -bound, bound)
        b = jax.random.uniform(kb, (fan_out,), jnp.float32, -bound, bound)
        return w, b

    w1, b1 = linear(ks[0], ks[1], num_observations, hidden_size)
    w2, b2 = linear(ks[2], ks[3], hidden_size, hidden_size)
    wm, bm = linear(ks[4], ks[5], hidden_size, num_actions)
    ws, bs = linear(ks[6], ks[7], hidden_size, num_actions)
    return dict(w1=w1, b1=b1, w2=w2, b2=b2, wm=wm, bm=bm, ws=ws, bs=bs)


def _reference_matched(state, prep, num_actions):
    """Plain-JAX reference using the SAME padded bf16 weights / math order."""
    wd = prep["w1"].dtype
    O_pad = prep["w1"].shape[0]
    s = jnp.pad(state, ((0, 0), (0, O_pad - state.shape[1])))
    x = jnp.maximum(jnp.dot(s.astype(wd), prep["w1"],
                            preferred_element_type=jnp.float32) + prep["b1"], 0.0)
    x = jnp.maximum(jnp.dot(x.astype(wd), prep["w2"],
                            preferred_element_type=jnp.float32) + prep["b2"], 0.0)
    head = jnp.dot(x.astype(wd), prep["w_head"],
                   preferred_element_type=jnp.float32) + prep["b_head"]
    head = jnp.minimum(jnp.maximum(head, prep["clip_lo"]), prep["clip_hi"])
    A = num_actions
    return head[:, :A], head[:, A:2 * A]


def _reference_f32(state, p):
    """Plain-JAX f32 reference of the original PyTorch forward."""
    x = jnp.maximum(state @ p["w1"].T + p["b1"], 0.0)
    x = jnp.maximum(x @ p["w2"].T + p["b2"], 0.0)
    mean = x @ p["wm"].T + p["bm"]
    log_std = jnp.clip(x @ p["ws"].T + p["bs"], LOG_SIG_MIN, LOG_SIG_MAX)
    return mean, log_std


if __name__ == "__main__":
    # Small shapes consistent with the module's forward:
    #   batch=8, num_observations=16, hidden_size=32, num_actions=8
    B, O, H, A = 8, 16, 32, 8
    act_limit = 1.0  # unused in forward(); only used by sample()

    key = jax.random.PRNGKey(0)
    k_state, k_params = jax.random.split(key)
    state = jax.random.normal(k_state, (B, O), jnp.float32)
    params = init_params(k_params, O, A, H)

    prepared = prepare_params(params)  # one-time param prep (bf16, lane-padded)

    mean, log_std = gaussian_policy_forward(state, prepared, num_actions=A)
    jax.block_until_ready((mean, log_std))

    assert mean.shape == (B, A) and log_std.shape == (B, A)

    # 1) Exact kernel correctness vs. a matched-precision JAX reference.
    mean_m, log_std_m = _reference_matched(state, prepared, A)
    assert jnp.allclose(mean, mean_m, atol=1e-4, rtol=1e-4), "mean mismatch"
    assert jnp.allclose(log_std, log_std_m, atol=1e-4, rtol=1e-4), "log_stddev mismatch"

    # 2) Semantic sanity vs. the f32 PyTorch forward (bf16 weight quantization
    #    introduces only a small deviation at these scales).
    mean_f, log_std_f = _reference_f32(state, params)
    assert jnp.allclose(mean, mean_f, atol=0.2), "mean deviates from f32 reference"
    assert jnp.allclose(log_std, log_std_f, atol=0.2), "log_stddev deviates from f32 reference"

    # TODO(synk): sample() (rsample + log_prob + tanh squash) relies on
    # torch.distributions.Normal; only forward() is implemented in the kernel.
    print("KERNEL_OK")
</pallas_src>

<mosaic_0001>
module attributes {stable_mosaic.version = 11 : i64} {
  func.func @_policy_kernel(%arg0: i32, %arg1: memref<8x128xf32, #tpu.memory_space<vmem>>, %arg2: memref<128x128xbf16, #tpu.memory_space<vmem>>, %arg3: memref<1x128xf32, #tpu.memory_space<vmem>>, %arg4: memref<128x128xbf16, #tpu.memory_space<vmem>>, %arg5: memref<1x128xf32, #tpu.memory_space<vmem>>, %arg6: memref<128x128xbf16, #tpu.memory_space<vmem>>, %arg7: memref<1x128xf32, #tpu.memory_space<vmem>>, %arg8: memref<1x128xf32, #tpu.memory_space<vmem>>, %arg9: memref<1x128xf32, #tpu.memory_space<vmem>>, %arg10: memref<8x128xf32, #tpu.memory_space<vmem>>) attributes {dimension_semantics = [#tpu.dimension_semantics<parallel>], iteration_bounds = array<i64: 1>, scalar_prefetch = 0 : i64, scratch_operands = 0 : i64, tpu.core_type = #tpu.core_type<tc>, window_params = [{transform_indices = @transform_0, window_bounds = array<i64: 8, 128>}, {pipeline_mode = #tpu.pipeline_mode<synchronous>, transform_indices = @transform_1, window_bounds = array<i64: 128, 128>}, {pipeline_mode = #tpu.pipeline_mode<synchronous>, transform_indices = @transform_2, window_bounds = array<i64: 1, 128>}, {pipeline_mode = #tpu.pipeline_mode<synchronous>, transform_indices = @transform_3, window_bounds = array<i64: 128, 128>}, {pipeline_mode = #tpu.pipeline_mode<synchronous>, transform_indices = @transform_4, window_bounds = array<i64: 1, 128>}, {pipeline_mode = #tpu.pipeline_mode<synchronous>, transform_indices = @transform_5, window_bounds = array<i64: 128, 128>}, {pipeline_mode = #tpu.pipeline_mode<synchronous>, transform_indices = @transform_6, window_bounds = array<i64: 1, 128>}, {pipeline_mode = #tpu.pipeline_mode<synchronous>, transform_indices = @transform_7, window_bounds = array<i64: 1, 128>}, {pipeline_mode = #tpu.pipeline_mode<synchronous>, transform_indices = @transform_8, window_bounds = array<i64: 1, 128>}, {transform_indices = @transform_9, window_bounds = array<i64: 8, 128>}]} {
    %c0 = arith.constant 0 : index
    %c0_0 = arith.constant 0 : index
    %0 = vector.load %arg1[%c0, %c0_0] : memref<8x128xf32, #tpu.memory_space<vmem>>, vector<8x128xf32>
    %1 = arith.truncf %0 : vector<8x128xf32> to vector<8x128xbf16>
    %c0_1 = arith.constant 0 : index
    %c0_2 = arith.constant 0 : index
    %2 = vector.load %arg2[%c0_1, %c0_2] : memref<128x128xbf16, #tpu.memory_space<vmem>>, vector<128x128xbf16>
    %cst = arith.constant dense<0.000000e+00> : vector<8x128xf32>
    %3 = tpu.matmul %1, %2, %cst {dimension_numbers = #tpu.dot_dimension_numbers<[1], [0], [0], [1], [0, 0, 1, 1], [], []>} : vector<8x128xbf16>, vector<128x128xbf16>, vector<8x128xf32> -> vector<8x128xf32>
    %c0_3 = arith.constant 0 : index
    %c0_4 = arith.constant 0 : index
    %4 = vector.load %arg3[%c0_3, %c0_4] : memref<1x128xf32, #tpu.memory_space<vmem>>, vector<1x128xf32>
    %5 = vector.broadcast %4 : vector<1x128xf32> to vector<8x128xf32>
    %6 = arith.addf %3, %5 : vector<8x128xf32>
    %cst_5 = arith.constant 0.000000e+00 : f32
    %7 = vector.broadcast %cst_5 : f32 to vector<8x128xf32>
    %8 = arith.maximumf %6, %7 : vector<8x128xf32>
    %9 = arith.truncf %8 : vector<8x128xf32> to vector<8x128xbf16>
    %c0_6 = arith.constant 0 : index
    %c0_7 = arith.constant 0 : index
    %10 = vector.load %arg4[%c0_6, %c0_7] : memref<128x128xbf16, #tpu.memory_space<vmem>>, vector<128x128xbf16>
    %cst_8 = arith.constant dense<0.000000e+00> : vector<8x128xf32>
    %11 = tpu.matmul %9, %10, %cst_8 {dimension_numbers = #tpu.dot_dimension_numbers<[1], [0], [0], [1], [0, 0, 1, 1], [], []>} : vector<8x128xbf16>, vector<128x128xbf16>, vector<8x128xf32> -> vector<8x128xf32>
    %c0_9 = arith.constant 0 : index
    %c0_10 = arith.constant 0 : index
    %12 = vector.load %arg5[%c0_9, %c0_10] : memref<1x128xf32, #tpu.memory_space<vmem>>, vector<1x128xf32>
    %13 = vector.broadcast %12 : vector<1x128xf32> to vector<8x128xf32>
    %14 = arith.addf %11, %13 : vector<8x128xf32>
    %cst_11 = arith.constant 0.000000e+00 : f32
    %15 = vector.broadcast %cst_11 : f32 to vector<8x128xf32>
    %16 = arith.maximumf %14, %15 : vector<8x128xf32>
    %17 = arith.truncf %16 : vector<8x128xf32> to vector<8x128xbf16>
    %c0_12 = arith.constant 0 : index
    %c0_13 = arith.constant 0 : index
    %18 = vector.load %arg6[%c0_12, %c0_13] : memref<128x128xbf16, #tpu.memory_space<vmem>>, vector<128x128xbf16>
    %cst_14 = arith.constant dense<0.000000e+00> : vector<8x128xf32>
    %19 = tpu.matmul %17, %18, %cst_14 {dimension_numbers = #tpu.dot_dimension_numbers<[1], [0], [0], [1], [0, 0, 1, 1], [], []>} : vector<8x128xbf16>, vector<128x128xbf16>, vector<8x128xf32> -> vector<8x128xf32>
    %c0_15 = arith.constant 0 : index
    %c0_16 = arith.constant 0 : index
    %20 = vector.load %arg7[%c0_15, %c0_16] : memref<1x128xf32, #tpu.memory_space<vmem>>, vector<1x128xf32>
    %21 = vector.broadcast %20 : vector<1x128xf32> to vector<8x128xf32>
    %22 = arith.addf %19, %21 : vector<8x128xf32>
    %c0_17 = arith.constant 0 : index
    %c0_18 = arith.constant 0 : index
    %23 = vector.load %arg9[%c0_17, %c0_18] : memref<1x128xf32, #tpu.memory_space<vmem>>, vector<1x128xf32>
    %24 = vector.broadcast %23 : vector<1x128xf32> to vector<8x128xf32>
    %25 = arith.maximumf %22, %24 : vector<8x128xf32>
    %c0_19 = arith.constant 0 : index
    %c0_20 = arith.constant 0 : index
    %26 = vector.load %arg8[%c0_19, %c0_20] : memref<1x128xf32, #tpu.memory_space<vmem>>, vector<1x128xf32>
    %27 = vector.broadcast %26 : vector<1x128xf32> to vector<8x128xf32>
    %28 = arith.minimumf %25, %27 : vector<8x128xf32>
    %c0_21 = arith.constant 0 : index
    %c0_22 = arith.constant 0 : index
    %29 = vector.load %arg10[%c0_21, %c0_22] : memref<8x128xf32, #tpu.memory_space<vmem>>, vector<8x128xf32>
    tpu.vector_store %arg10[%c0_21, %c0_22], %28 {strides = array<i32>} : memref<8x128xf32, #tpu.memory_space<vmem>>, vector<8x128xf32>,
    return
  }
  func.func @transform_0(%arg0: i32) -> (i32, i32) {
    %c0_i32 = arith.constant 0 : i32
    %c0_i32_0 = arith.constant 0 : i32
    return %arg0, %c0_i32 : i32, i32
  }
  func.func @transform_1(%arg0: i32) -> (i32, i32) {
    %c0_i32 = arith.constant 0 : i32
    %c0_i32_0 = arith.constant 0 : i32
    %c0_i32_1 = arith.constant 0 : i32
    return %c0_i32, %c0_i32_0 : i32, i32
  }
  func.func @transform_2(%arg0: i32) -> (i32, i32) {
    %c0_i32 = arith.constant 0 : i32
    %c0_i32_0 = arith.constant 0 : i32
    %c0_i32_1 = arith.constant 0 : i32
    return %c0_i32, %c0_i32_0 : i32, i32
  }
  func.func @transform_3(%arg0: i32) -> (i32, i32) {
    %c0_i32 = arith.constant 0 : i32
    %c0_i32_0 = arith.constant 0 : i32
    %c0_i32_1 = arith.constant 0 : i32
    return %c0_i32, %c0_i32_0 : i32, i32
  }
  func.func @transform_4(%arg0: i32) -> (i32, i32) {
    %c0_i32 = arith.constant 0 : i32
    %c0_i32_0 = arith.constant 0 : i32
    %c0_i32_1 = arith.constant 0 : i32
    return %c0_i32, %c0_i32_0 : i32, i32
  }
  func.func @transform_5(%arg0: i32) -> (i32, i32) {
    %c0_i32 = arith.constant 0 : i32
    %c0_i32_0 = arith.constant 0 : i32
    %c0_i32_1 = arith.constant 0 : i32
    return %c0_i32, %c0_i32_0 : i32, i32
  }
  func.func @transform_6(%arg0: i32) -> (i32, i32) {
    %c0_i32 = arith.constant 0 : i32
    %c0_i32_0 = arith.constant 0 : i32
    %c0_i32_1 = arith.constant 0 : i32
    return %c0_i32, %c0_i32_0 : i32, i32
  }
  func.func @transform_7(%arg0: i32) -> (i32, i32) {
    %c0_i32 = arith.constant 0 : i32
    %c0_i32_0 = arith.constant 0 : i32
    %c0_i32_1 = arith.constant 0 : i32
    return %c0_i32, %c0_i32_0 : i32, i32
  }
  func.func @transform_8(%arg0: i32) -> (i32, i32) {
    %c0_i32 = arith.constant 0 : i32
    %c0_i32_0 = arith.constant 0 : i32
    %c0_i32_1 = arith.constant 0 : i32
    return %c0_i32, %c0_i32_0 : i32, i32
  }
  func.func @transform_9(%arg0: i32) -> (i32, i32) {
    %c0_i32 = arith.constant 0 : i32
    %c0_i32_0 = arith.constant 0 : i32
    return %arg0, %c0_i32 : i32, i32
  }
}

</mosaic_0001>

<llo_original>
// kernel: gaussian_policy_forward.1
$region0: #{gaussian_policy_forward.1}
  #allocation0 [shape = 'u32[]', space=smem, size = 0x4, offset = 0x4, fixed_abs, tag = 'smem constant byte address 0x4 - core index']
  #allocation1 [shape = 'u32[144,128]{1,0:T(1,128)}', space=vmem, size = 0x12000, scoped, tag = 'internal scratch']
  %s0 = inlined_call_operand.vmem [shape: f32[8,128], index: 0, kind: input, shape index: {}]
  %s1 = inlined_call_operand.hbm [shape: bf16[128,128], index: 1, kind: input, shape index: {}]
  %s2 = inlined_call_operand.vmem [shape: f32[1,128], index: 2, kind: input, shape index: {}]
  %s3 = inlined_call_operand.hbm [shape: bf16[128,128], index: 3, kind: input, shape index: {}]
  %s4 = inlined_call_operand.vmem [shape: f32[1,128], index: 4, kind: input, shape index: {}]
  %s5 = inlined_call_operand.hbm [shape: bf16[128,128], index: 5, kind: input, shape index: {}]
  %s6 = inlined_call_operand.vmem [shape: f32[1,128], index: 6, kind: input, shape index: {}]
  %s7 = inlined_call_operand.vmem [shape: f32[1,128], index: 7, kind: input, shape index: {}]
  %s8 = inlined_call_operand.vmem [shape: f32[1,128], index: 8, kind: input, shape index: {}]
  %s9 = inlined_call_operand.vmem [shape: f32[8,128], index: 9, kind: output, shape index: {}]
  %s10 = sld [smem:[#allocation0]]
  $region58: #{gaussian_policy_forward.1} parent=0
    _
  %s12 = ssub.s32 1, %s10
  %s13 = scalar_select 0, %s12, %s10
  $region1: #{gaussian_policy_forward.1} parent=0
    #allocation2 [shape = 'u8[32768]{0}', space=vmem, size = 0x8000, scoped, tag = 'input window, operand 1, single buffered']
    #allocation3 [shape = 's32[1]{0}', space=sflag, size = 0x4, scoped, tag = 'scoped memory for gaussian_policy_forward.1']
    #allocation4 [shape = 'u8[32768]{0}', space=vmem, size = 0x8000, scoped, tag = 'input window, operand 3, single buffered']
    #allocation5 [shape = 's32[1]{0}', space=sflag, size = 0x4, scoped, tag = 'scoped memory for gaussian_policy_forward.1']
    #allocation6 [shape = 'u8[32768]{0}', space=vmem, size = 0x8000, scoped, tag = 'input window, operand 5, single buffered']
    %14 = vsyncpa [#allocation3], 0
    %15 = vsyncpa [#allocation5], 0
    // Predicated region
    $region2: #{gaussian_policy_forward.1} parent=1 // pred_check
      _
    $region3: #{gaussian_policy_forward.1} parent=1 // pred_check_branch
      %17 = sbr.rel (0) target = $region5
    $region4: #{gaussian_policy_forward.1} parent=1 // pred_region
      _
    $region5: #{gaussian_policy_forward.1} parent=1 // pred_fallthru
      _
    // Predicated region
    $region6: #{gaussian_policy_forward.1} parent=1 // pred_check
      _
    $region7: #{gaussian_policy_forward.1} parent=1 // pred_check_branch
      %19 = sbr.rel (0) target = $region9
    $region8: #{gaussian_policy_forward.1} parent=1 // pred_region
      %s21 = ssub.s32 1024, 1024
      %22 = vsyncadd [#allocation3], %s21
      %s23 = sshll.u32 [#allocation2], 4
      %s24 = int_to_ptr.vmem [resolvable:$true] %s23
      %29 = dma.hbm_to_vmem [thread:$0]  %s1, 1024, %s24, [#allocation3], 64, 64, 4
    $region9: #{gaussian_policy_forward.1} parent=1 // pred_fallthru
      _
    // Predicated region
    $region10: #{gaussian_policy_forward.1} parent=1 // pred_check
      _
    $region11: #{gaussian_policy_forward.1} parent=1 // pred_check_branch
      %31 = sbr.rel (0) target = $region13
    $region12: #{gaussian_policy_forward.1} parent=1 // pred_region
      _
    $region13: #{gaussian_policy_forward.1} parent=1 // pred_fallthru
      _
    // Predicated region
    $region14: #{gaussian_policy_forward.1} parent=1 // pred_check
      _
    $region15: #{gaussian_policy_forward.1} parent=1 // pred_check_branch
      %33 = sbr.rel (0) target = $region17
    $region16: #{gaussian_policy_forward.1} parent=1 // pred_region
      %s35 = ssub.s32 1024, 1024
      %36 = vsyncadd [#allocation5], %s35
      %s37 = sshll.u32 [#allocation4], 4
      %s38 = int_to_ptr.vmem [resolvable:$true] %s37
      %43 = dma.hbm_to_vmem [thread:$0]  %s3, 1024, %s38, [#allocation5], 64, 64, 4
    $region17: #{gaussian_policy_forward.1} parent=1 // pred_fallthru
      _
    // Predicated region
    $region18: #{gaussian_policy_forward.1} parent=1 // pred_check
      _
    $region19: #{gaussian_policy_forward.1} parent=1 // pred_check_branch
      %45 = sbr.rel (0) target = $region21
    $region20: #{gaussian_policy_forward.1} parent=1 // pred_region
      _
    $region21: #{gaussian_policy_forward.1} parent=1 // pred_fallthru
      _
    // Predicated region
    $region22: #{gaussian_policy_forward.1} parent=1 // pred_check
      _
    $region23: #{gaussian_policy_forward.1} parent=1 // pred_check_branch
      %47 = sbr.rel (0) target = $region25
    $region24: #{gaussian_policy_forward.1} parent=1 // pred_region
      %s49 = ssub.s32 1024, 1024
      %50 = vsyncadd [#allocation5], %s49
      %s51 = sshll.u32 [#allocation6], 4
      %s52 = int_to_ptr.vmem [resolvable:$true] %s51
      %57 = dma.hbm_to_vmem [thread:$0]  %s5, 1024, %s52, [#allocation5], 64, 64, 4
    $region25: #{gaussian_policy_forward.1} parent=1 // pred_fallthru
      _
    // Predicated region
    $region26: #{gaussian_policy_forward.1} parent=1 // pred_check
      _
    $region27: #{gaussian_policy_forward.1} parent=1 // pred_check_branch
      %59 = sbr.rel (0) target = $region29
    $region28: #{gaussian_policy_forward.1} parent=1 // pred_region
      _
    $region29: #{gaussian_policy_forward.1} parent=1 // pred_fallthru
      _
    // Predicated region
    $region30: #{gaussian_policy_forward.1} parent=1 // pred_check
      _
    $region31: #{gaussian_policy_forward.1} parent=1 // pred_check_branch
      %61 = sbr.rel (0) target = $region33
    $region32: #{gaussian_policy_forward.1} parent=1 // pred_region
      _
    $region33: #{gaussian_policy_forward.1} parent=1 // pred_fallthru
      _
    // Predicated region
    $region34: #{gaussian_policy_forward.1} parent=1 // pred_check
      _
    $region35: #{gaussian_policy_forward.1} parent=1 // pred_check_branch
      %63 = sbr.rel (0) target = $region37
    $region36: #{gaussian_policy_forward.1} parent=1 // pred_region
      _
    $region37: #{gaussian_policy_forward.1} parent=1 // pred_fallthru
      _
    // Predicated region
    $region38: #{gaussian_policy_forward.1} parent=1 // pred_check
      _
    $region39: #{gaussian_policy_forward.1} parent=1 // pred_check_branch
      %65 = sbr.rel (0) target = $region41
    $region40: #{gaussian_policy_forward.1} parent=1 // pred_region
      %66 = dma.done [#allocation3], 1024
    $region41: #{gaussian_policy_forward.1} parent=1 // pred_fallthru
      _
    // Predicated region
    $region42: #{gaussian_policy_forward.1} parent=1 // pred_check
      _
    $region43: #{gaussian_policy_forward.1} parent=1 // pred_check_branch
      %68 = sbr.rel (0) target = $region45
    $region44: #{gaussian_policy_forward.1} parent=1 // pred_region
      %69 = dma.done [#allocation5], 1024
    $region45: #{gaussian_policy_forward.1} parent=1 // pred_fallthru
      _
    // Predicated region
    $region46: #{gaussian_policy_forward.1} parent=1 // pred_check
      _
    $region47: #{gaussian_policy_forward.1} parent=1 // pred_check_branch
      %71 = sbr.rel (0) target = $region49
    $region48: #{gaussian_policy_forward.1} parent=1 // pred_region
      %72 = dma.done [#allocation5], 1024
    $region49: #{gaussian_policy_forward.1} parent=1 // pred_fallthru
      _
    %v74 = vld [vmem:[%s0] sm:$0xff]
    %v75 = vpack.c.bf16 %v74, %v74
    %v76 = vld [vmem:[#allocation2] sm:$0xf]
    %v77 = vld [vmem:[#allocation2 + $0x4] sm:$0xf]
    %v78 = vld [vmem:[#allocation2 + $0x8] sm:$0xf]
    %v79 = vld [vmem:[#allocation2 + $0xc] sm:$0xf]
    %v80 = vld [vmem:[#allocation2 + $0x10] sm:$0xf]
    %v81 = vld [vmem:[#allocation2 + $0x14] sm:$0xf]
    %v82 = vld [vmem:[#allocation2 + $0x18] sm:$0xf]
    %v83 = vld [vmem:[#allocation2 + $0x1c] sm:$0xf]
    %v84 = vld [vmem:[#allocation2 + $0x20] sm:$0xf]
    %v85 = vld [vmem:[#allocation2 + $0x24] sm:$0xf]
    %v86 = vld [vmem:[#allocation2 + $0x28] sm:$0xf]
    %v87 = vld [vmem:[#allocation2 + $0x2c] sm:$0xf]
    %v88 = vld [vmem:[#allocation2 + $0x30] sm:$0xf]
    %v89 = vld [vmem:[#allocation2 + $0x34] sm:$0xf]
    %v90 = vld [vmem:[#allocation2 + $0x38] sm:$0xf]
    %v91 = vld [vmem:[#allocation2 + $0x3c] sm:$0xf]
    %v92 = vld [vmem:[%s2] sm:$0x1]
    %v94 = vlaneseq
    %v95 = vshrl.u32 %v94, 7
    %v96 = vsub.s32 0, %v95
    %v97 = vrot.slane %v92, %v96
    %v115 = vunpack.c.l.b16 %v76
    %v116 = vunpack.c.l.b16 %v77
    %v117 = vunpack.c.l.b16 %v78
    %v118 = vunpack.c.l.b16 %v79
    %v119 = vunpack.c.l.b16 %v80
    %v120 = vunpack.c.l.b16 %v81
    %v121 = vunpack.c.l.b16 %v82
    %v122 = vunpack.c.l.b16 %v83
    %v123 = vunpack.c.l.b16 %v84
    %v124 = vunpack.c.l.b16 %v85
    %v125 = vunpack.c.l.b16 %v86
    %v126 = vunpack.c.l.b16 %v87
    %v127 = vunpack.c.l.b16 %v88
    %v128 = vunpack.c.l.b16 %v89
    %v129 = vunpack.c.l.b16 %v90
    %v130 = vunpack.c.l.b16 %v91
    %v131 = vpack.c.b16 %v116, %v115
    %v132 = vpack.c.b16 %v118, %v117
    %v133 = vpack.c.b16 %v120, %v119
    %v134 = vpack.c.b16 %v122, %v121
    %v135 = vpack.c.b16 %v124, %v123
    %v136 = vpack.c.b16 %v126, %v125
    %v137 = vpack.c.b16 %v128, %v127
    %v138 = vpack.c.b16 %v130, %v129
    %147 = vmatprep.subr.bf16.mxu0 0
    %148 = vmatpush1.bf16.msra.mxu0 %v131
    %149 = vmatprep.subr.bf16.mxu0 0
    %150 = vmatpush1.bf16.msra.mxu0 %v132
    %151 = vmatprep.subr.bf16.mxu0 0
    %152 = vmatpush1.bf16.msra.mxu0 %v133
    %153 = vmatprep.subr.bf16.mxu0 0
    %154 = vmatpush1.bf16.msra.mxu0 %v134
    %155 = vmatprep.subr.bf16.mxu0 0
    %156 = vmatpush1.bf16.msra.mxu0 %v135
    %157 = vmatprep.subr.bf16.mxu0 0
    %158 = vmatpush1.bf16.msra.mxu0 %v136
    %159 = vmatprep.subr.bf16.mxu0 0
    %160 = vmatpush1.bf16.msra.mxu0 %v137
    %161 = vmatprep.subr.bf16.mxu0 0
    %162 = vmatpush1.bf16.msra.mxu0 %v138
    %163 = vmatprep.subr.bf16.mxu0 0
    %164 = vmatpush1.bf16.msra.mxu0 0
    %165 = vmatprep.subr.bf16.mxu0 0
    %166 = vmatpush1.bf16.msra.mxu0 0
    %167 = vmatprep.subr.bf16.mxu0 0
    %168 = vmatpush1.bf16.msra.mxu0 0
    %169 = vmatprep.subr.bf16.mxu0 0
    %170 = vmatpush1.bf16.msra.mxu0 0
    %171 = vmatprep.subr.bf16.mxu0 0
    %172 = vmatpush1.bf16.msra.mxu0 0
    %173 = vmatprep.subr.bf16.mxu0 0
    %174 = vmatpush1.bf16.msra.mxu0 0
    %175 = vmatprep.subr.bf16.mxu0 0
    %176 = vmatpush1.bf16.msra.mxu0 0
    %177 = vmatprep.subr.bf16.mxu0 0
    %178 = vmatpush1.bf16.msra.mxu0 0
    %179 = vmatprep.mubr.bf16.mxu0 0
    %180 = vmatmul.mubr.bf16.gmra.mrb[0].mxu0 %v75
    %v181 = vpop.f32.mrb[0].mxu0
    %v182 = vadd.f32 %v97, %v181
    %v183 = vpop.f32.mrb[0].mxu0
    %v184 = vpop.f32.mrb[0].mxu0
    %v185 = vpop.f32.mrb[0].mxu0
    %186 = vdwg.mxu0
    %v187 = vmax.f32 %v182, 0.0
    %v188 = vpack.c.bf16 %v187, %v187
    %v189 = vld [vmem:[#allocation4] sm:$0xf]
    %v190 = vld [vmem:[#allocation4 + $0x4] sm:$0xf]
    %v191 = vld [vmem:[#allocation4 + $0x8] sm:$0xf]
    %v192 = vld [vmem:[#allocation4 + $0xc] sm:$0xf]
    %v193 = vld [vmem:[#allocation4 + $0x10] sm:$0xf]
    %v194 = vld [vmem:[#allocation4 + $0x14] sm:$0xf]
    %v195 = vld [vmem:[#allocation4 + $0x18] sm:$0xf]
    %v196 = vld [vmem:[#allocation4 + $0x1c] sm:$0xf]
    %v197 = vld [vmem:[#allocation4 + $0x20] sm:$0xf]
    %v198 = vld [vmem:[#allocation4 + $0x24] sm:$0xf]
    %v199 = vld [vmem:[#allocation4 + $0x28] sm:$0xf]
    %v200 = vld [vmem:[#allocation4 + $0x2c] sm:$0xf]
    %v201 = vld [vmem:[#allocation4 + $0x30] sm:$0xf]
    %v202 = vld [vmem:[#allocation4 + $0x34] sm:$0xf]
    %v203 = vld [vmem:[#allocation4 + $0x38] sm:$0xf]
    %v204 = vld [vmem:[#allocation4 + $0x3c] sm:$0xf]
    %v205 = vld [vmem:[%s4] sm:$0x1]
    %v207 = vlaneseq
    %v208 = vshrl.u32 %v207, 7
    %v209 = vsub.s32 0, %v208
    %v210 = vrot.slane %v205, %v209
    %v228 = vunpack.c.l.b16 %v189
    %v229 = vunpack.c.l.b16 %v190
    %v230 = vunpack.c.l.b16 %v191
    %v231 = vunpack.c.l.b16 %v192
    %v232 = vunpack.c.l.b16 %v193
    %v233 = vunpack.c.l.b16 %v194
    %v234 = vunpack.c.l.b16 %v195
    %v235 = vunpack.c.l.b16 %v196
    %v236 = vunpack.c.l.b16 %v197
    %v237 = vunpack.c.l.b16 %v198
    %v238 = vunpack.c.l.b16 %v199
    %v239 = vunpack.c.l.b16 %v200
    %v240 = vunpack.c.l.b16 %v201
    %v241 = vunpack.c.l.b16 %v202
    %v242 = vunpack.c.l.b16 %v203
    %v243 = vunpack.c.l.b16 %v204
    %v244 = vpack.c.b16 %v229, %v228
    %v245 = vpack.c.b16 %v231, %v230
    %v246 = vpack.c.b16 %v233, %v232
    %v247 = vpack.c.b16 %v235, %v234
    %v248 = vpack.c.b16 %v237, %v236
    %v249 = vpack.c.b16 %v239, %v238
    %v250 = vpack.c.b16 %v241, %v240
    %v251 = vpack.c.b16 %v243, %v242
    %260 = vmatprep.subr.bf16.mxu0 0
    %261 = vmatpush1.bf16.msra.mxu0 %v244
    %262 = vmatprep.subr.bf16.mxu0 0
    %263 = vmatpush1.bf16.msra.mxu0 %v245
    %264 = vmatprep.subr.bf16.mxu0 0
    %265 = vmatpush1.bf16.msra.mxu0 %v246
    %266 = vmatprep.subr.bf16.mxu0 0
    %267 = vmatpush1.bf16.msra.mxu0 %v247
    %268 = vmatprep.subr.bf16.mxu0 0
    %269 = vmatpush1.bf16.msra.mxu0 %v248
    %270 = vmatprep.subr.bf16.mxu0 0
    %271 = vmatpush1.bf16.msra.mxu0 %v249
    %272 = vmatprep.subr.bf16.mxu0 0
    %273 = vmatpush1.bf16.msra.mxu0 %v250
    %274 = vmatprep.subr.bf16.mxu0 0
    %275 = vmatpush1.bf16.msra.mxu0 %v251
    %276 = vmatprep.subr.bf16.mxu0 0
    %277 = vmatpush1.bf16.msra.mxu0 0
    %278 = vmatprep.subr.bf16.mxu0 0
    %279 = vmatpush1.bf16.msra.mxu0 0
    %280 = vmatprep.subr.bf16.mxu0 0
    %281 = vmatpush1.bf16.msra.mxu0 0
    %282 = vmatprep.subr.bf16.mxu0 0
    %283 = vmatpush1.bf16.msra.mxu0 0
    %284 = vmatprep.subr.bf16.mxu0 0
    %285 = vmatpush1.bf16.msra.mxu0 0
    %286 = vmatprep.subr.bf16.mxu0 0
    %287 = vmatpush1.bf16.msra.mxu0 0
    %288 = vmatprep.subr.bf16.mxu0 0
    %289 = vmatpush1.bf16.msra.mxu0 0
    %290 = vmatprep.subr.bf16.mxu0 0
    %291 = vmatpush1.bf16.msra.mxu0 0
    %292 = vmatprep.mubr.bf16.mxu0 0
    %293 = vmatmul.mubr.bf16.gmra.mrb[0].mxu0 %v188
    %v294 = vpop.f32.mrb[0].mxu0
    %v295 = vadd.f32 %v210, %v294
    %v296 = vpop.f32.mrb[0].mxu0
    %v297 = vpop.f32.mrb[0].mxu0
    %v298 = vpop.f32.mrb[0].mxu0
    %299 = vdwg.mxu0
    %v300 = vmax.f32 %v295, 0.0
    %v301 = vpack.c.bf16 %v300, %v300
    %v302 = vld [vmem:[#allocation6] sm:$0xf]
    %v303 = vld [vmem:[#allocation6 + $0x4] sm:$0xf]
    %v304 = vld [vmem:[#allocation6 + $0x8] sm:$0xf]
    %v305 = vld [vmem:[#allocation6 + $0xc] sm:$0xf]
    %v306 = vld [vmem:[#allocation6 + $0x10] sm:$0xf]
    %v307 = vld [vmem:[#allocation6 + $0x14] sm:$0xf]
    %v308 = vld [vmem:[#allocation6 + $0x18] sm:$0xf]
    %v309 = vld [vmem:[#allocation6 + $0x1c] sm:$0xf]
    %v310 = vld [vmem:[#allocation6 + $0x20] sm:$0xf]
    %v311 = vld [vmem:[#allocation6 + $0x24] sm:$0xf]
    %v312 = vld [vmem:[#allocation6 + $0x28] sm:$0xf]
    %v313 = vld [vmem:[#allocation6 + $0x2c] sm:$0xf]
    %v314 = vld [vmem:[#allocation6 + $0x30] sm:$0xf]
    %v315 = vld [vmem:[#allocation6 + $0x34] sm:$0xf]
    %v316 = vld [vmem:[#allocation6 + $0x38] sm:$0xf]
    %v317 = vld [vmem:[#allocation6 + $0x3c] sm:$0xf]
    %v318 = vld [vmem:[%s6] sm:$0x1]
    %v320 = vlaneseq
    %v321 = vshrl.u32 %v320, 7
    %v322 = vsub.s32 0, %v321
    %v323 = vrot.slane %v318, %v322
    %v341 = vunpack.c.l.b16 %v302
    %v342 = vunpack.c.l.b16 %v303
    %v343 = vunpack.c.l.b16 %v304
    %v344 = vunpack.c.l.b16 %v305
    %v345 = vunpack.c.l.b16 %v306
    %v346 = vunpack.c.l.b16 %v307
    %v347 = vunpack.c.l.b16 %v308
    %v348 = vunpack.c.l.b16 %v309
    %v349 = vunpack.c.l.b16 %v310
    %v350 = vunpack.c.l.b16 %v311
    %v351 = vunpack.c.l.b16 %v312
    %v352 = vunpack.c.l.b16 %v313
    %v353 = vunpack.c.l.b16 %v314
    %v354 = vunpack.c.l.b16 %v315
    %v355 = vunpack.c.l.b16 %v316
    %v356 = vunpack.c.l.b16 %v317
    %v357 = vpack.c.b16 %v342, %v341
    %v358 = vpack.c.b16 %v344, %v343
    %v359 = vpack.c.b16 %v346, %v345
    %v360 = vpack.c.b16 %v348, %v347
    %v361 = vpack.c.b16 %v350, %v349
    %v362 = vpack.c.b16 %v352, %v351
    %v363 = vpack.c.b16 %v354, %v353
    %v364 = vpack.c.b16 %v356, %v355
    %373 = vmatprep.subr.bf16.mxu0 0
    %374 = vmatpush1.bf16.msra.mxu0 %v357
    %375 = vmatprep.subr.bf16.mxu0 0
    %376 = vmatpush1.bf16.msra.mxu0 %v358
    %377 = vmatprep.subr.bf16.mxu0 0
    %378 = vmatpush1.bf16.msra.mxu0 %v359
    %379 = vmatprep.subr.bf16.mxu0 0
    %380 = vmatpush1.bf16.msra.mxu0 %v360
    %381 = vmatprep.subr.bf16.mxu0 0
    %382 = vmatpush1.bf16.msra.mxu0 %v361
    %383 = vmatprep.subr.bf16.mxu0 0
    %384 = vmatpush1.bf16.msra.mxu0 %v362
    %385 = vmatprep.subr.bf16.mxu0 0
    %386 = vmatpush1.bf16.msra.mxu0 %v363
    %387 = vmatprep.subr.bf16.mxu0 0
    %388 = vmatpush1.bf16.msra.mxu0 %v364
    %389 = vmatprep.subr.bf16.mxu0 0
    %390 = vmatpush1.bf16.msra.mxu0 0
    %391 = vmatprep.subr.bf16.mxu0 0
    %392 = vmatpush1.bf16.msra.mxu0 0
    %393 = vmatprep.subr.bf16.mxu0 0
    %394 = vmatpush1.bf16.msra.mxu0 0
    %395 = vmatprep.subr.bf16.mxu0 0
    %396 = vmatpush1.bf16.msra.mxu0 0
    %397 = vmatprep.subr.bf16.mxu0 0
    %398 = vmatpush1.bf16.msra.mxu0 0
    %399 = vmatprep.subr.bf16.mxu0 0
    %400 = vmatpush1.bf16.msra.mxu0 0
    %401 = vmatprep.subr.bf16.mxu0 0
    %402 = vmatpush1.bf16.msra.mxu0 0
    %403 = vmatprep.subr.bf16.mxu0 0
    %404 = vmatpush1.bf16.msra.mxu0 0
    %405 = vmatprep.mubr.bf16.mxu0 0
    %406 = vmatmul.mubr.bf16.gmra.mrb[0].mxu0 %v301
    %v407 = vpop.f32.mrb[0].mxu0
    %v408 = vadd.f32 %v323, %v407
    %v409 = vpop.f32.mrb[0].mxu0
    %v410 = vpop.f32.mrb[0].mxu0
    %v411 = vpop.f32.mrb[0].mxu0
    %412 = vdwg.mxu0
    %v413 = vld [vmem:[%s8] sm:$0x1]
    %v415 = vlaneseq
    %v416 = vshrl.u32 %v415, 7
    %v417 = vsub.s32 0, %v416
    %v418 = vrot.slane %v413, %v417
    %v420 = vmax.f32 %v408, %v418
    %v421 = vld [vmem:[%s7] sm:$0x1]
    %v423 = vlaneseq
    %v424 = vshrl.u32 %v423, 7
    %v425 = vsub.s32 0, %v424
    %v426 = vrot.slane %v421, %v425
    %v428 = vmin.f32 %v420, %v426
    %429 = vst [vmem:[%s9] sm:$0xff] %v428
    // Predicated region
    $region50: #{gaussian_policy_forward.1} parent=1 // pred_check
      _
    $region51: #{gaussian_policy_forward.1} parent=1 // pred_check_branch
      %431 = sbr.rel (0) target = $region53
    $region52: #{gaussian_policy_forward.1} parent=1 // pred_region
      _
    $region53: #{gaussian_policy_forward.1} parent=1 // pred_fallthru
      _
    // Predicated region
    $region54: #{gaussian_policy_forward.1} parent=1 // pred_check
      _
    $region55: #{gaussian_policy_forward.1} parent=1 // pred_check_branch
      %433 = sbr.rel (0) target = $region57
    $region56: #{gaussian_policy_forward.1} parent=1 // pred_region
      _
    $region57: #{gaussian_policy_forward.1} parent=1 // pred_fallthru
      _
    %434 = vsyncpa [#allocation3], 1
    %435 = vsyncpa [#allocation5], 1

</llo_original>
